<compile_context>
chip_gen: v5e
topology: v5e:2x2
jax: 0.10.0
libtpu: 0.0.40
codegen_flags: <defaults>
</compile_context>

<pallas_src>
import functools

import jax
import jax.numpy as jnp
from jax.experimental import pallas as pl
from jax.experimental.pallas import tpu as pltpu


def _round_up(n, m):
    return ((n + m - 1) // m) * m


def _cdiv(n, m):
    return (n + m - 1) // m


def _autoencoder_kernel(x_ref, wg_ref, bg_ref, wh_ref, bh_ref, o_ref):
    """One batch tile of the full autoencoder forward.

    x_ref  : (TB, NQ)  input tile (f32 or bf16)
    wg_ref : (NQ, K)   encoder weight, pre-transposed (x @ wg)
    bg_ref : (1, K)    encoder bias (f32)
    wh_ref : (K, NQ)   decoder weight, pre-transposed (enc @ wh)
    bh_ref : (1, NQ)   decoder bias (f32)
    o_ref  : (TB, NQ)  output tile (f32 or bf16)
    """
    wg = wg_ref[...]
    wh = wh_ref[...]

    # In-kernel operand cast (only if dtypes differ): VPU work hidden under DMA,
    # avoids an extra wrapper-side HBM pass over x.
    x = x_ref[...]
    if x.dtype != wg.dtype:
        x = x.astype(wg.dtype)

    # Encoder: MXU matmul with f32 accumulation; bias-add + sigmoid stay f32
    # (EUP/VPU epilogue, overlaps the MXU / DMA).
    pre_g = jnp.dot(x, wg, preferred_element_type=jnp.float32)
    enc = jax.nn.sigmoid(pre_g + bg_ref[...])

    enc_mm = enc if enc.dtype == wh.dtype else enc.astype(wh.dtype)
    pre_h = jnp.dot(enc_mm, wh, preferred_element_type=jnp.float32)
    dec = jax.nn.sigmoid(pre_h + bh_ref[...])

    o_ref[...] = dec.astype(o_ref.dtype)


@functools.partial(
    jax.jit,
    static_argnames=("tile_b", "use_bf16_matmul", "out_dtype", "min_grid_steps"),
)
def autoencoder_forward(x, g_weight, g_bias, h_weight, h_bias, *,
                        tile_b=1024, use_bf16_matmul=False,
                        out_dtype=jnp.float32, min_grid_steps=2):
    """Pallas-backed AutoEncoder forward.

    x        : (B, NQ) user vectors
    g_weight : (K, NQ)  PyTorch layout (g.weight)
    g_bias   : (K,)
    h_weight : (NQ, K)  PyTorch layout (h.weight)
    h_bias   : (NQ,)

    tile_b          : batch-tile target (rows per grid step). 1024-2048 is a good
                      range for small NQ on v6e/v7x; on v7x re-derive against the
                      64 MiB VMEM budget if NQ is large.
    use_bf16_matmul : feed the MXU bf16 operands (valid on v5e/v6e/v7x); the
                      accumulation, bias-add and sigmoid stay f32.
    out_dtype       : output dtype; bf16 halves output HBM traffic.
    min_grid_steps  : keep >= 2 so DMA/compute overlap and both v7x TensorCores
                      get work even for small batches.
    """
    B, NQ = x.shape
    K = g_weight.shape[0]
    out_dt = jnp.dtype(out_dtype)

    # Kernel-friendly layouts: x @ W with biases as (1, features) rows.
    wg_t = g_weight.T                                  # (NQ, K)
    wh_t = h_weight.T                                  # (K, NQ)
    bg = g_bias.reshape(1, K).astype(jnp.float32)
    bh = h_bias.reshape(1, NQ).astype(jnp.float32)

    if use_bf16_matmul:
        # Only the weights are cast here (tiny, reused every step). x is cast
        # inside the kernel to avoid an extra wrapper-side read+write of x.
        wg_t = wg_t.astype(jnp.bfloat16)
        wh_t = wh_t.astype(jnp.bfloat16)

    # Sublane quantum for the batch-tile: 16 rows if any streamed tensor is
    # sub-32-bit (bf16 packs 2 rows/sublane), else 8.
    row_q = 16 if (out_dt.itemsize < 4 or x.dtype.itemsize < 4) else 8

    # Tile heuristic: at most tile_b rows per step, at least min_grid_steps grid
    # steps when the batch allows it, tile rounded to the sublane quantum.
    # The grid is cdiv(B, tile); the ragged last block (if any) is masked by
    # Pallas (OOB reads padded, OOB writes dropped) -- no jnp.pad copy of x and
    # at most one partially wasted tile instead of rounding B up to a full tile.
    steps = max(1, _cdiv(B, tile_b))
    if B > row_q:
        steps = max(steps, min_grid_steps)
    tile = max(row_q, _round_up(_cdiv(B, steps), row_q))
    tile = min(tile, _round_up(B, row_q))
    steps = _cdiv(B, tile)

    # VMEM budget derived from the chosen tile (double-buffered x/out tiles,
    # single-buffered weights/biases, f32 intermediates), with 2x headroom,
    # capped at the v7x 64 MiB ceiling.
    x_bytes = x.dtype.itemsize
    w_bytes = wg_t.dtype.itemsize
    o_bytes = out_dt.itemsize
    vmem_needed = (
        2 * tile * NQ * x_bytes            # x tile, double-buffered
        + 2 * tile * NQ * o_bytes          # out tile, double-buffered
        + 2 * NQ * K * w_bytes             # both weights, single-buffered
        + (K + NQ) * 4                     # biases
        + tile * (2 * K + NQ) * 4          # f32 intermediates (pre_g, enc, pre_h)
    )
    vmem_limit = int(min(64 * 1024 * 1024, max(32 * 1024 * 1024, 2 * vmem_needed)))

    # Advisory cost estimate (two matmuls + two sigmoids + true HBM traffic).
    cost = pl.CostEstimate(
        flops=4 * B * NQ * K,
        transcendentals=B * (K + NQ),
        bytes_accessed=(B * NQ * (x_bytes + o_bytes)
                        + 2 * NQ * K * w_bytes + (K + NQ) * 4),
    )

    const = pl.Buffered(1)  # weights/biases are grid-invariant -> single buffer

    out = pl.pallas_call(
        _autoencoder_kernel,
        out_shape=jax.ShapeDtypeStruct((B, NQ), out_dt),
        grid_spec=pltpu.PrefetchScalarGridSpec(
            num_scalar_prefetch=0,
            grid=(steps,),
            in_specs=[
                pl.BlockSpec((tile, NQ), lambda i: (i, 0)),                     # x tile
                pl.BlockSpec((NQ, K), lambda i: (0, 0), pipeline_mode=const),   # Wg^T
                pl.BlockSpec((1, K), lambda i: (0, 0), pipeline_mode=const),    # bg
                pl.BlockSpec((K, NQ), lambda i: (0, 0), pipeline_mode=const),   # Wh^T
                pl.BlockSpec((1, NQ), lambda i: (0, 0), pipeline_mode=const),   # bh
            ],
            out_specs=pl.BlockSpec((tile, NQ), lambda i: (i, 0)),
        ),
        compiler_params=pltpu.CompilerParams(
            dimension_semantics=("parallel",),
            vmem_limit_bytes=vmem_limit,
        ),
        cost_estimate=cost,
    )(x, wg_t, bg, wh_t, bh)

    return out


def init_autoencoder_params(key, num_question, k):
    """Deterministic init mirroring nn.Linear's uniform(-1/sqrt(fan_in), +1/sqrt(fan_in))."""
    kg_w, kg_b, kh_w, kh_b = jax.random.split(key, 4)
    bound_g = 1.0 / jnp.sqrt(num_question)   # g: Linear(num_question -> k)
    bound_h = 1.0 / jnp.sqrt(k)              # h: Linear(k -> num_question)

    g_weight = jax.random.uniform(kg_w, (k, num_question), jnp.float32, -bound_g, bound_g)
    g_bias = jax.random.uniform(kg_b, (k,), jnp.float32, -bound_g, bound_g)
    h_weight = jax.random.uniform(kh_w, (num_question, k), jnp.float32, -bound_h, bound_h)
    h_bias = jax.random.uniform(kh_b, (num_question,), jnp.float32, -bound_h, bound_h)
    return g_weight, g_bias, h_weight, h_bias


def reference_forward(x, g_weight, g_bias, h_weight, h_bias):
    """Pure-JAX reference matching the PyTorch module exactly."""
    enc = jax.nn.sigmoid(x @ g_weight.T + g_bias)
    dec = jax.nn.sigmoid(enc @ h_weight.T + h_bias)
    return dec


if __name__ == "__main__":
    num_question = 256   # feature dim (lane axis)
    k = 128              # hidden dim
    batch = 100          # deliberately not a multiple of the tile -> ragged last block

    key = jax.random.PRNGKey(0)
    k_params, k_x = jax.random.split(key)

    g_weight, g_bias, h_weight, h_bias = init_autoencoder_params(k_params, num_question, k)
    x = jax.random.uniform(k_x, (batch, num_question), jnp.float32)

    ref = reference_forward(x, g_weight, g_bias, h_weight, h_bias)

    # f32 path (exact check).
    out = autoencoder_forward(x, g_weight, g_bias, h_weight, h_bias)
    out = jax.block_until_ready(out)
    assert out.shape == (batch, num_question)
    assert out.dtype == jnp.float32
    assert jnp.allclose(out, ref, atol=1e-5, rtol=1e-5), "f32 kernel mismatch vs reference"

    # bf16 MXU operands + bf16 output (HBM-bound fast path); looser tolerance is
    # the intentional trade (bf16 activations into the K=128 contraction + bf16
    # output rounding).
    out_fast = autoencoder_forward(x, g_weight, g_bias, h_weight, h_bias,
                                   use_bf16_matmul=True, out_dtype=jnp.bfloat16)
    out_fast = jax.block_until_ready(out_fast)
    assert out_fast.shape == (batch, num_question)
    assert out_fast.dtype == jnp.bfloat16
    assert jnp.allclose(out_fast.astype(jnp.float32), ref, atol=3e-2, rtol=3e-2), \
        "bf16 kernel mismatch vs reference"

    print("KERNEL_OK")
</pallas_src>

<mosaic_0001>
module attributes {stable_mosaic.version = 11 : i64} {
  func.func @_autoencoder_kernel(%arg0: i32, %arg1: memref<56x256xf32, #tpu.memory_space<vmem>>, %arg2: memref<256x128xf32, #tpu.memory_space<vmem>>, %arg3: memref<1x128xf32, #tpu.memory_space<vmem>>, %arg4: memref<128x256xf32, #tpu.memory_space<vmem>>, %arg5: memref<1x256xf32, #tpu.memory_space<vmem>>, %arg6: memref<56x256xf32, #tpu.memory_space<vmem>>) attributes {dimension_semantics = [#tpu.dimension_semantics<parallel>], iteration_bounds = array<i64: 2>, scalar_prefetch = 0 : i64, scratch_operands = 0 : i64, tpu.core_type = #tpu.core_type<tc>, window_params = [{transform_indices = @transform_0, window_bounds = array<i64: 56, 256>}, {pipeline_mode = #tpu.pipeline_mode<synchronous>, transform_indices = @transform_1, window_bounds = array<i64: 256, 128>}, {pipeline_mode = #tpu.pipeline_mode<synchronous>, transform_indices = @transform_2, window_bounds = array<i64: 1, 128>}, {pipeline_mode = #tpu.pipeline_mode<synchronous>, transform_indices = @transform_3, window_bounds = array<i64: 128, 256>}, {pipeline_mode = #tpu.pipeline_mode<synchronous>, transform_indices = @transform_4, window_bounds = array<i64: 1, 256>}, {transform_indices = @transform_5, window_bounds = array<i64: 56, 256>}]} {
    %c0 = arith.constant 0 : index
    %c0_0 = arith.constant 0 : index
    %0 = vector.load %arg2[%c0, %c0_0] : memref<256x128xf32, #tpu.memory_space<vmem>>, vector<256x128xf32>
    %c0_1 = arith.constant 0 : index
    %c0_2 = arith.constant 0 : index
    %1 = vector.load %arg4[%c0_1, %c0_2] : memref<128x256xf32, #tpu.memory_space<vmem>>, vector<128x256xf32>
    %c0_3 = arith.constant 0 : index
    %c0_4 = arith.constant 0 : index
    %2 = vector.load %arg1[%c0_3, %c0_4] : memref<56x256xf32, #tpu.memory_space<vmem>>, vector<56x256xf32>
    %cst = arith.constant dense<0.000000e+00> : vector<56x128xf32>
    %3 = tpu.matmul %2, %0, %cst {dimension_numbers = #tpu.dot_dimension_numbers<[1], [0], [0], [1], [0, 0, 1, 1], [], []>} : vector<56x256xf32>, vector<256x128xf32>, vector<56x128xf32> -> vector<56x128xf32>
    %c0_5 = arith.constant 0 : index
    %c0_6 = arith.constant 0 : index
    %4 = vector.load %arg3[%c0_5, %c0_6] : memref<1x128xf32, #tpu.memory_space<vmem>>, vector<1x128xf32>
    %5 = vector.broadcast %4 : vector<1x128xf32> to vector<56x128xf32>
    %6 = arith.addf %3, %5 : vector<56x128xf32>
    %7 = arith.negf %6 : vector<56x128xf32>
    %8 = math.exp %7 : vector<56x128xf32>
    %cst_7 = arith.constant 1.000000e+00 : f32
    %9 = vector.broadcast %cst_7 : f32 to vector<56x128xf32>
    %10 = arith.addf %9, %8 : vector<56x128xf32>
    %11 = arith.divf %9, %10 : vector<56x128xf32>
    %cst_8 = arith.constant dense<0.000000e+00> : vector<56x256xf32>
    %12 = tpu.matmul %11, %1, %cst_8 {dimension_numbers = #tpu.dot_dimension_numbers<[1], [0], [0], [1], [0, 0, 1, 1], [], []>} : vector<56x128xf32>, vector<128x256xf32>, vector<56x256xf32> -> vector<56x256xf32>
    %c0_9 = arith.constant 0 : index
    %c0_10 = arith.constant 0 : index
    %13 = vector.load %arg5[%c0_9, %c0_10] : memref<1x256xf32, #tpu.memory_space<vmem>>, vector<1x256xf32>
    %14 = vector.broadcast %13 : vector<1x256xf32> to vector<56x256xf32>
    %15 = arith.addf %12, %14 : vector<56x256xf32>
    %16 = arith.negf %15 : vector<56x256xf32>
    %17 = math.exp %16 : vector<56x256xf32>
    %cst_11 = arith.constant 1.000000e+00 : f32
    %18 = vector.broadcast %cst_11 : f32 to vector<56x256xf32>
    %19 = arith.addf %18, %17 : vector<56x256xf32>
    %20 = arith.divf %18, %19 : vector<56x256xf32>
    %c0_12 = arith.constant 0 : index
    %c0_13 = arith.constant 0 : index
    %21 = vector.load %arg6[%c0_12, %c0_13] : memref<56x256xf32, #tpu.memory_space<vmem>>, vector<56x256xf32>
    tpu.vector_store %arg6[%c0_12, %c0_13], %20 {strides = array<i32>} : memref<56x256xf32, #tpu.memory_space<vmem>>, vector<56x256xf32>,
    return
  }
  func.func @transform_0(%arg0: i32) -> (i32, i32) {
    %c0_i32 = arith.constant 0 : i32
    %c0_i32_0 = arith.constant 0 : i32
    return %arg0, %c0_i32 : i32, i32
  }
  func.func @transform_1(%arg0: i32) -> (i32, i32) {
    %c0_i32 = arith.constant 0 : i32
    %c0_i32_0 = arith.constant 0 : i32
    %c0_i32_1 = arith.constant 0 : i32
    return %c0_i32, %c0_i32_0 : i32, i32
  }
  func.func @transform_2(%arg0: i32) -> (i32, i32) {
    %c0_i32 = arith.constant 0 : i32
    %c0_i32_0 = arith.constant 0 : i32
    %c0_i32_1 = arith.constant 0 : i32
    return %c0_i32, %c0_i32_0 : i32, i32
  }
  func.func @transform_3(%arg0: i32) -> (i32, i32) {
    %c0_i32 = arith.constant 0 : i32
    %c0_i32_0 = arith.constant 0 : i32
    %c0_i32_1 = arith.constant 0 : i32
    return %c0_i32, %c0_i32_0 : i32, i32
  }
  func.func @transform_4(%arg0: i32) -> (i32, i32) {
    %c0_i32 = arith.constant 0 : i32
    %c0_i32_0 = arith.constant 0 : i32
    %c0_i32_1 = arith.constant 0 : i32
    return %c0_i32, %c0_i32_0 : i32, i32
  }
  func.func @transform_5(%arg0: i32) -> (i32, i32) {
    %c0_i32 = arith.constant 0 : i32
    %c0_i32_0 = arith.constant 0 : i32
    return %arg0, %c0_i32 : i32, i32
  }
}

</mosaic_0001>

<llo_original>
// kernel: autoencoder_forward.1
$region0: #{autoencoder_forward.1}
  #allocation0 [shape = 'u32[]', space=smem, size = 0x4, offset = 0x4, fixed_abs, tag = 'smem constant byte address 0x4 - core index']
  #allocation1 [shape = 'u32[72,128]{1,0:T(1,128)}', space=vmem, size = 0x9000, scoped, tag = 'internal scratch']
  %s0 = inlined_call_operand.vmem [shape: f32[100,256], index: 0, kind: input, shape index: {}]
  %s1 = inlined_call_operand.vmem [shape: f32[256,128], index: 1, kind: input, shape index: {}]
  %s2 = inlined_call_operand.vmem [shape: f32[1,128], index: 2, kind: input, shape index: {}]
  %s3 = inlined_call_operand.vmem [shape: f32[128,256], index: 3, kind: input, shape index: {}]
  %s4 = inlined_call_operand.vmem [shape: f32[1,256], index: 4, kind: input, shape index: {}]
  %s5 = inlined_call_operand.hbm [shape: f32[100,256], index: 5, kind: output, shape index: {}]
  %s6 = sld [smem:[#allocation0]]
  $region53: #{autoencoder_forward.1} parent=0
    _
  %s8 = ssub.s32 1, %s6
  %s9 = scalar_select 0, %s8, %s6
  $region1: #{autoencoder_forward.1} parent=0
    #allocation2 [shape = 'u8[114688]{0}', space=vmem, size = 0x1c000, scoped, tag = 'output window, operand 0']
    #allocation3 [shape = 's32[2]{0}', space=sflag, size = 0x8, scoped, tag = 'scoped memory for autoencoder_forward.1']
    %10 = vsyncpa [#allocation3], 0
    %s11 = scalar_lea.sflag [#allocation3], 1
    %12 = vsyncpa %s11, 0
    loop: start=0, step=1, limit=4
    $region2: #{autoencoder_forward.1} parent=1 // loop_pre_header
      _
    $region3: #{autoencoder_forward.1} parent=1 // loop_header
      %s14 = sphi 0, %s18
      %p15 = scmp.ge.s32.totalorder %s14, 4
      %s24 = sphi 0, %s26
      %s27 = sphi 0, %s24
      %s28 = sphi 0, %s27
      %s44 = sphi 0, %s28
      %s48 = sphi 0, %s48
      %s50 = sphi 0, %s48
      %s51 = sphi 0, %s50
      %s65 = sphi 0, %s51
      %s69 = sphi 0, %s69
      %s71 = sphi 0, %s69
      %s72 = sphi 0, %s71
      %s86 = sphi 0, %s72
      %s90 = sphi 0, %s90
      %s92 = sphi 0, %s90
      %s93 = sphi 0, %s92
      %s107 = sphi 0, %s93
      %s111 = sphi 0, %s111
      %s113 = sphi 0, %s111
      %s114 = sphi 0, %s113
      %s128 = sphi 0, %s114
      %s134 = sphi 0, %s136
      %s137 = sphi 0, %s134
      %s138 = sphi 0, %s137
      %s154 = sphi 0, %s138
    $region4: #{autoencoder_forward.1} parent=1 // loop_header_branch
      %17 = sbr.rel (%p15) target = $region8
    $region5: #{autoencoder_forward.1} parent=1 // loop_body
      %s19 = ssub.s32 %s14, 1
      %s20 = ssub.s32 %s14, 2
      %s21 = sadd.s32 %s14, 1
      %s22 = ssub.s32 %s14, %s21
      %p23 = scmp.eq.s32.totalorder %s22, 0
      %s25 = sadd.s32 %s24, 1
      %s26 = scalar_select %p23, %s24, %s25
      %p29 = pneg %p23
      %p30 = scmp.eq.s32.totalorder %s14, 1
      %p31 = por %p29, %p30
      %p32 = scmp.ne.s32.totalorder %s24, %s27
      %p33 = scmp.eq.s32.totalorder %s14, 0
      %p34 = por %p32, %p33
      %p35 = scmp.ne.s32.totalorder %s24, %s27
      %p36 = scmp.eq.s32.totalorder %s19, 1
      %p37 = por %p35, %p36
      %p38 = scmp.ne.s32.totalorder %s27, %s28
      %p39 = scmp.eq.s32.totalorder %s19, 0
      %p40 = por %p38, %p39
      %p41 = scmp.ne.s32.totalorder %s27, %s28
      %p42 = scmp.eq.s32.totalorder %s20, 1
      %p43 = por %p41, %p42
      %p45 = scmp.ne.s32.totalorder %s28, %s44
      %p46 = scmp.eq.s32.totalorder %s20, 0
      %p47 = por %p45, %p46
      %s49 = sadd.s32 %s48, 1
      %p52 = scmp.eq.s32.totalorder %s14, 1
      %p53 = scmp.ne.s32.totalorder %s48, %s50
      %p54 = scmp.eq.s32.totalorder %s14, 0
      %p55 = por %p53, %p54
      %p56 = scmp.ne.s32.totalorder %s48, %s50
      %p57 = scmp.eq.s32.totalorder %s19, 1
      %p58 = por %p56, %p57
      %p59 = scmp.ne.s32.totalorder %s50, %s51
      %p60 = scmp.eq.s32.totalorder %s19, 0
      %p61 = por %p59, %p60
      %p62 = scmp.ne.s32.totalorder %s50, %s51
      %p63 = scmp.eq.s32.totalorder %s20, 1
      %p64 = por %p62, %p63
      %p66 = scmp.ne.s32.totalorder %s51, %s65
      %p67 = scmp.eq.s32.totalorder %s20, 0
      %p68 = por %p66, %p67
      %s70 = sadd.s32 %s69, 1
      %p73 = scmp.eq.s32.totalorder %s14, 1
      %p74 = scmp.ne.s32.totalorder %s69, %s71
      %p75 = scmp.eq.s32.totalorder %s14, 0
      %p76 = por %p74, %p75
      %p77 = scmp.ne.s32.totalorder %s69, %s71
      %p78 = scmp.eq.s32.totalorder %s19, 1
      %p79 = por %p77, %p78
      %p80 = scmp.ne.s32.totalorder %s71, %s72
      %p81 = scmp.eq.s32.totalorder %s19, 0
      %p82 = por %p80, %p81
      %p83 = scmp.ne.s32.totalorder %s71, %s72
      %p84 = scmp.eq.s32.totalorder %s20, 1
      %p85 = por %p83, %p84
      %p87 = scmp.ne.s32.totalorder %s72, %s86
      %p88 = scmp.eq.s32.totalorder %s20, 0
      %p89 = por %p87, %p88
      %s91 = sadd.s32 %s90, 1
      %p94 = scmp.eq.s32.totalorder %s14, 1
      %p95 = scmp.ne.s32.totalorder %s90, %s92
      %p96 = scmp.eq.s32.totalorder %s14, 0
      %p97 = por %p95, %p96
      %p98 = scmp.ne.s32.totalorder %s90, %s92
      %p99 = scmp.eq.s32.totalorder %s19, 1
      %p100 = por %p98, %p99
      %p101 = scmp.ne.s32.totalorder %s92, %s93
      %p102 = scmp.eq.s32.totalorder %s19, 0
      %p103 = por %p101, %p102
      %p104 = scmp.ne.s32.totalorder %s92, %s93
      %p105 = scmp.eq.s32.totalorder %s20, 1
      %p106 = por %p104, %p105
      %p108 = scmp.ne.s32.totalorder %s93, %s107
      %p109 = scmp.eq.s32.totalorder %s20, 0
      %p110 = por %p108, %p109
      %s112 = sadd.s32 %s111, 1
      %p115 = scmp.eq.s32.totalorder %s14, 1
      %p116 = scmp.ne.s32.totalorder %s111, %s113
      %p117 = scmp.eq.s32.totalorder %s14, 0
      %p118 = por %p116, %p117
      %p119 = scmp.ne.s32.totalorder %s111, %s113
      %p120 = scmp.eq.s32.totalorder %s19, 1
      %p121 = por %p119, %p120
      %p122 = scmp.ne.s32.totalorder %s113, %s114
      %p123 = scmp.eq.s32.totalorder %s19, 0
      %p124 = por %p122, %p123
      %p125 = scmp.ne.s32.totalorder %s113, %s114
      %p126 = scmp.eq.s32.totalorder %s20, 1
      %p127 = por %p125, %p126
      %p129 = scmp.ne.s32.totalorder %s114, %s128
      %p130 = scmp.eq.s32.totalorder %s20, 0
      %p131 = por %p129, %p130
      %s132 = ssub.s32 %s14, %s21
      %p133 = scmp.eq.s32.totalorder %s132, 0
      %s135 = sadd.s32 %s134, 1
      %s136 = scalar_select %p133, %s134, %s135
      %p139 = pneg %p133
      %p140 = scmp.eq.s32.totalorder %s14, 1
      %p141 = por %p139, %p140
      %p142 = scmp.ne.s32.totalorder %s134, %s137
      %p143 = scmp.eq.s32.totalorder %s14, 0
      %p144 = por %p142, %p143
      %p145 = scmp.ne.s32.totalorder %s134, %s137
      %p146 = scmp.eq.s32.totalorder %s19, 1
      %p147 = por %p145, %p146
      %p148 = scmp.ne.s32.totalorder %s137, %s138
      %p149 = scmp.eq.s32.totalorder %s19, 0
      %p150 = por %p148, %p149
      %p151 = scmp.ne.s32.totalorder %s137, %s138
      %p152 = scmp.eq.s32.totalorder %s20, 1
      %p153 = por %p151, %p152
      %p155 = scmp.ne.s32.totalorder %s138, %s154
      %p156 = scmp.eq.s32.totalorder %s20, 0
      %p157 = por %p155, %p156
      %p158 = scmp.le.s32.totalorder 1, %s14
      %p159 = scmp.lt.s32.totalorder %s14, 3
      %p160 = pnand %p158, %p159
      %p161 = pneg %p160
      // Predicated region
      $region9: #{autoencoder_forward.1} parent=5 // pred_check
        _
      $region10: #{autoencoder_forward.1} parent=5 // pred_check_branch
        %163 = sbr.rel (%p160) target = $region12
      $region11: #{autoencoder_forward.1} parent=5 // pred_region
        %s164 = ssub.s32 %s14, 1
        // Predicated region
        $region13: #{autoencoder_forward.1} parent=11 // pred_check
          %p165 = pneg %p61
        $region14: #{autoencoder_forward.1} parent=11 // pred_check_branch
          %167 = sbr.rel (%p165) target = $region16
        $region15: #{autoencoder_forward.1} parent=11 // pred_region
          _
        $region16: #{autoencoder_forward.1} parent=11 // pred_fallthru
          _
        // Predicated region
        $region17: #{autoencoder_forward.1} parent=11 // pred_check
          %p168 = pneg %p82
        $region18: #{autoencoder_forward.1} parent=11 // pred_check_branch
          %170 = sbr.rel (%p168) target = $region20
        $region19: #{autoencoder_forward.1} parent=11 // pred_region
          _
        $region20: #{autoencoder_forward.1} parent=11 // pred_fallthru
          _
        // Predicated region
        $region21: #{autoencoder_forward.1} parent=11 // pred_check
          %p171 = pneg %p103
        $region22: #{autoencoder_forward.1} parent=11 // pred_check_branch
          %173 = sbr.rel (%p171) target = $region24
        $region23: #{autoencoder_forward.1} parent=11 // pred_region
          _
        $region24: #{autoencoder_forward.1} parent=11 // pred_fallthru
          _
        // Predicated region
        $region25: #{autoencoder_forward.1} parent=11 // pred_check
          %p174 = pneg %p124
        $region26: #{autoencoder_forward.1} parent=11 // pred_check_branch
          %176 = sbr.rel (%p174) target = $region28
        $region27: #{autoencoder_forward.1} parent=11 // pred_region
          _
        $region28: #{autoencoder_forward.1} parent=11 // pred_fallthru
          _
      $region12: #{autoencoder_forward.1} parent=5 // pred_fallthru
        _
      %p177 = scmp.lt.s32.totalorder %s14, 2
      // Predicated region
      $region29: #{autoencoder_forward.1} parent=5 // pred_check
        %p178 = pneg %p177
      $region30: #{autoencoder_forward.1} parent=5 // pred_check_branch
        %180 = sbr.rel (%p178) target = $region32
      $region31: #{autoencoder_forward.1} parent=5 // pred_region
        // Predicated region
        $region33: #{autoencoder_forward.1} parent=31 // pred_check
          %p181 = pneg %p34
        $region34: #{autoencoder_forward.1} parent=31 // pred_check_branch
          %183 = sbr.rel (%p181) target = $region36
        $region35: #{autoencoder_forward.1} parent=31 // pred_region
          %s184 = smul.u32 7, %s14
          %s185 = ssub.s32 13, %s184
          %p186 = scmp.lt.s32.totalorder %s185, 7
          %s187 = scalar_select %p186, %s185, 7
          %s188 = smul.u32 8, %s187
          %s189 = smul.u32 %s188, 2
          %p190 = scmp.lt.s32.totalorder %s184, 12
          %s191 = scalar_select %p190, %s184, 12
          %s192 = smul.addr %s191, 2
          %s193 = smul.addr %s192, 8
          %s194 = scalar_lea.vmem %s0, %s193
          %s195 = smul.u32 7, %s14
          %s196 = ssub.s32 13, %s195
          %p197 = scmp.lt.s32.totalorder %s196, 7
          %s198 = scalar_select %p197, %s196, 7
          %s199 = smul.u32 8, %s198
          %s200 = smul.u32 %s199, 2
        $region36: #{autoencoder_forward.1} parent=31 // pred_fallthru
          _
      $region32: #{autoencoder_forward.1} parent=5 // pred_fallthru
        _
      %p201 = scmp.le.s32.totalorder 1, %s14
      %p202 = scmp.lt.s32.totalorder %s14, 3
      %p203 = pnand %p201, %p202
      %p204 = pneg %p203
      // Predicated region
      $region37: #{autoencoder_forward.1} parent=5 // pred_check
        _
      $region38: #{autoencoder_forward.1} parent=5 // pred_check_branch
        %206 = sbr.rel (%p203) target = $region40
      $region39: #{autoencoder_forward.1} parent=5 // pred_region
        %s207 = ssub.s32 %s14, 1
        %s208 = smul.u32 7, %s19
        %s209 = ssub.s32 13, %s208
        %p210 = scmp.lt.s32.totalorder %s209, 7
        %s211 = scalar_select %p210, %s209, 7
        %s212 = smul.u32 8, %s211
        %s213 = smul.u32 %s212, 2
        %p214 = scmp.lt.s32.totalorder %s208, 12
        %s215 = scalar_select %p214, %s208, 12
        %s216 = smul.addr %s215, 2
        %s217 = smul.addr %s216, 8
        %s218 = scalar_lea.vmem %s0, %s217
        %p219 = pneg %p40
        %p220 = pneg %p37
        %p221 = pneg %p61
        %p222 = pneg %p58
        %p223 = pneg %p82
        %p224 = pneg %p79
        %p225 = pneg %p103
        %p226 = pneg %p100
        %p227 = pneg %p124
        %p228 = pneg %p121
        %p229 = pneg %p150
        %p230 = pneg %p147
        %s231 = sand.u32 %s137, 1
        %s232 = scalar_lea.sflag [#allocation3], %s231
        %s233 = sand.u32 %s137, 1
        %s234 = smul.addr %s233, 112
        %s235 = scalar_lea.vmem [#allocation2], %s234
        %s236 = smul.u32 7, %s19
        %s237 = ssub.s32 13, %s236
        %p238 = scmp.lt.s32.totalorder %s237, 7
        %s239 = scalar_select %p238, %s237, 7
        %s240 = smul.u32 8, %s239
        %s241 = smul.u32 %s240, 2
        %p242 = scmp.lt.s32.totalorder %s236, 12
        %s243 = scalar_select %p242, %s236, 12
        %s244 = smul.addr %s243, 2
        %s245 = smul.addr %s244, 8
        %s246 = scalar_lea.vmem %s0, %s245
        %s247 = smul.u32 7, %s19
        %s248 = ssub.s32 13, %s247
        %p249 = scmp.lt.s32.totalorder %s248, 7
        %s250 = scalar_select %p249, %s248, 7
        %s251 = smul.u32 8, %s250
        %s252 = smul.u32 %s251, 2
        %s253 = smul.u32 7, %s19
        %s254 = ssub.s32 13, %s253
        %p255 = scmp.lt.s32.totalorder %s254, 7
        %s256 = scalar_select %p255, %s254, 7
        %s257 = smul.u32 8, %s256
        %s258 = smul.u32 %s257, 2
        %v259 = vld [vmem:[%s1] sm:$0xff]
        %v260 = vld [vmem:[%s1 + $0x8] sm:$0xff]
        %v261 = vld [vmem:[%s1 + $0x10] sm:$0xff]
        %v262 = vld [vmem:[%s1 + $0x18] sm:$0xff]
        %v263 = vld [vmem:[%s1 + $0x20] sm:$0xff]
        %v264 = vld [vmem:[%s1 + $0x28] sm:$0xff]
        %v265 = vld [vmem:[%s1 + $0x30] sm:$0xff]
        %v266 = vld [vmem:[%s1 + $0x38] sm:$0xff]
        %v267 = vld [vmem:[%s1 + $0x40] sm:$0xff]
        %v268 = vld [vmem:[%s1 + $0x48] sm:$0xff]
        %v269 = vld [vmem:[%s1 + $0x50] sm:$0xff]
        %v270 = vld [vmem:[%s1 + $0x58] sm:$0xff]
        %v271 = vld [vmem:[%s1 + $0x60] sm:$0xff]
        %v272 = vld [vmem:[%s1 + $0x68] sm:$0xff]
        %v273 = vld [vmem:[%s1 + $0x70] sm:$0xff]
        %v274 = vld [vmem:[%s1 + $0x78] sm:$0xff]
        %v275 = vld [vmem:[%s1 + $0x80] sm:$0xff]
        %v276 = vld [vmem:[%s1 + $0x88] sm:$0xff]
        %v277 = vld [vmem:[%s1 + $0x90] sm:$0xff]
        %v278 = vld [vmem:[%s1 + $0x98] sm:$0xff]
        %v279 = vld [vmem:[%s1 + $0xa0] sm:$0xff]
        %v280 = vld [vmem:[%s1 + $0xa8] sm:$0xff]
        %v281 = vld [vmem:[%s1 + $0xb0] sm:$0xff]
        %v282 = vld [vmem:[%s1 + $0xb8] sm:$0xff]
        %v283 = vld [vmem:[%s1 + $0xc0] sm:$0xff]
        %v284 = vld [vmem:[%s1 + $0xc8] sm:$0xff]
        %v285 = vld [vmem:[%s1 + $0xd0] sm:$0xff]
        %v286 = vld [vmem:[%s1 + $0xd8] sm:$0xff]
        %v287 = vld [vmem:[%s1 + $0xe0] sm:$0xff]
        %v288 = vld [vmem:[%s1 + $0xe8] sm:$0xff]
        %v289 = vld [vmem:[%s1 + $0xf0] sm:$0xff]
        %v290 = vld [vmem:[%s1 + $0xf8] sm:$0xff]
        %v291 = vld [vmem:[%s3] sm:$0xff]
        %v292 = vld [vmem:[%s3 + $0x8] sm:$0xff]
        %v293 = vld [vmem:[%s3 + $0x10] sm:$0xff]
        %v294 = vld [vmem:[%s3 + $0x18] sm:$0xff]
        %v295 = vld [vmem:[%s3 + $0x20] sm:$0xff]
        %v296 = vld [vmem:[%s3 + $0x28] sm:$0xff]
        %v297 = vld [vmem:[%s3 + $0x30] sm:$0xff]
        %v298 = vld [vmem:[%s3 + $0x38] sm:$0xff]
        %v299 = vld [vmem:[%s3 + $0x40] sm:$0xff]
        %v300 = vld [vmem:[%s3 + $0x48] sm:$0xff]
        %v301 = vld [vmem:[%s3 + $0x50] sm:$0xff]
        %v302 = vld [vmem:[%s3 + $0x58] sm:$0xff]
        %v303 = vld [vmem:[%s3 + $0x60] sm:$0xff]
        %v304 = vld [vmem:[%s3 + $0x68] sm:$0xff]
        %v305 = vld [vmem:[%s3 + $0x70] sm:$0xff]
        %v306 = vld [vmem:[%s3 + $0x78] sm:$0xff]
        %v307 = vld [vmem:[%s3 + $0x80] sm:$0xff]
        %v308 = vld [vmem:[%s3 + $0x88] sm:$0xff]
        %v309 = vld [vmem:[%s3 + $0x90] sm:$0xff]
        %v310 = vld [vmem:[%s3 + $0x98] sm:$0xff]
        %v311 = vld [vmem:[%s3 + $0xa0] sm:$0xff]
        %v312 = vld [vmem:[%s3 + $0xa8] sm:$0xff]
        %v313 = vld [vmem:[%s3 + $0xb0] sm:$0xff]
        %v314 = vld [vmem:[%s3 + $0xb8] sm:$0xff]
        %v315 = vld [vmem:[%s3 + $0xc0] sm:$0xff]
        %v316 = vld [vmem:[%s3 + $0xc8] sm:$0xff]
        %v317 = vld [vmem:[%s3 + $0xd0] sm:$0xff]
        %v318 = vld [vmem:[%s3 + $0xd8] sm:$0xff]
        %v319 = vld [vmem:[%s3 + $0xe0] sm:$0xff]
        %v320 = vld [vmem:[%s3 + $0xe8] sm:$0xff]
        %v321 = vld [vmem:[%s3 + $0xf0] sm:$0xff]
        %v322 = vld [vmem:[%s3 + $0xf8] sm:$0xff]
        %v323 = vld [vmem:[%s246] sm:$0xff]
        %v324 = vld [vmem:[%s246 + $0x8] sm:$0xff]
        %v325 = vld [vmem:[%s246 + $0x10] sm:$0xff]
        %v326 = vld [vmem:[%s246 + $0x18] sm:$0xff]
        %v327 = vld [vmem:[%s246 + $0x20] sm:$0xff]
        %v328 = vld [vmem:[%s246 + $0x28] sm:$0xff]
        %v329 = vld [vmem:[%s246 + $0x30] sm:$0xff]
        %v330 = vld [vmem:[%s246 + $0x38] sm:$0xff]
        %v331 = vld [vmem:[%s246 + $0x40] sm:$0xff]
        %v332 = vld [vmem:[%s246 + $0x48] sm:$0xff]
        %v333 = vld [vmem:[%s246 + $0x50] sm:$0xff]
        %v334 = vld [vmem:[%s246 + $0x58] sm:$0xff]
        %v335 = vld [vmem:[%s246 + $0x60] sm:$0xff]
        %v336 = vld [vmem:[%s246 + $0x68] sm:$0xff]
        %v337 = vld [vmem:[%s2] sm:$0x1]
        %v339 = vperm.slane %v337, 0
        %341 = vmatpush.msra.mxu0 %v274
        %342 = vmatpush.msra.mxu0 %v273
        %343 = vmatpush.msra.mxu0 %v272
        %344 = vmatpush.msra.mxu0 %v271
        %345 = vmatpush.msra.mxu0 %v270
        %346 = vmatpush.msra.mxu0 %v269
        %347 = vmatpush.msra.mxu0 %v268
        %348 = vmatpush.msra.mxu0 %v267
        %349 = vmatpush.msra.mxu0 %v266
        %350 = vmatpush.msra.mxu0 %v265
        %351 = vmatpush.msra.mxu0 %v264
        %352 = vmatpush.msra.mxu0 %v263
        %353 = vmatpush.msra.mxu0 %v262
        %354 = vmatpush.msra.mxu0 %v261
        %355 = vmatpush.msra.mxu0 %v260
        %356 = vmatpush.msra.mxu0 %v259
        %357 = vmatmul.f32.gmra.mxu0 %v323
        %v358 = vpop.f32.mrf.mxu0
        %v359 = vadd.f32 %v339, %v358
        %360 = vmatmul.f32.gmra.mxu0 %v325
        %v361 = vpop.f32.mrf.mxu0
        %v362 = vadd.f32 %v339, %v361
        %363 = vmatmul.f32.gmra.mxu0 %v327
        %v364 = vpop.f32.mrf.mxu0
        %v365 = vadd.f32 %v339, %v364
        %366 = vmatmul.f32.gmra.mxu0 %v329
        %v367 = vpop.f32.mrf.mxu0
        %v368 = vadd.f32 %v339, %v367
        %369 = vmatmul.f32.gmra.mxu0 %v331
        %v370 = vpop.f32.mrf.mxu0
        %v371 = vadd.f32 %v339, %v370
        %372 = vmatmul.f32.gmra.mxu0 %v333
        %v373 = vpop.f32.mrf.mxu0
        %v374 = vadd.f32 %v339, %v373
        %375 = vmatmul.f32.gmra.mxu0 %v335
        %v376 = vpop.f32.mrf.mxu0
        %v377 = vadd.f32 %v339, %v376
        %378 = vdwg.mxu0
        %379 = vmatpush.msra.mxu0 %v290
        %380 = vmatpush.msra.mxu0 %v289
        %381 = vmatpush.msra.mxu0 %v288
        %382 = vmatpush.msra.mxu0 %v287
        %383 = vmatpush.msra.mxu0 %v286
        %384 = vmatpush.msra.mxu0 %v285
        %385 = vmatpush.msra.mxu0 %v284
        %386 = vmatpush.msra.mxu0 %v283
        %387 = vmatpush.msra.mxu0 %v282
        %388 = vmatpush.msra.mxu0 %v281
        %389 = vmatpush.msra.mxu0 %v280
        %390 = vmatpush.msra.mxu0 %v279
        %391 = vmatpush.msra.mxu0 %v278
        %392 = vmatpush.msra.mxu0 %v277
        %393 = vmatpush.msra.mxu0 %v276
        %394 = vmatpush.msra.mxu0 %v275
        %395 = vmatmul.f32.gmra.mxu0 %v324
        %v396 = vpop.f32.mrf.mxu0
        %v397 = vadd.f32 %v359, %v396
        %398 = vmatmul.f32.gmra.mxu0 %v326
        %v399 = vpop.f32.mrf.mxu0
        %v400 = vadd.f32 %v362, %v399
        %401 = vmatmul.f32.gmra.mxu0 %v328
        %v402 = vpop.f32.mrf.mxu0
        %v403 = vadd.f32 %v365, %v402
        %404 = vmatmul.f32.gmra.mxu0 %v330
        %v405 = vpop.f32.mrf.mxu0
        %v406 = vadd.f32 %v368, %v405
        %407 = vmatmul.f32.gmra.mxu0 %v332
        %v408 = vpop.f32.mrf.mxu0
        %v409 = vadd.f32 %v371, %v408
        %410 = vmatmul.f32.gmra.mxu0 %v334
        %v411 = vpop.f32.mrf.mxu0
        %v412 = vadd.f32 %v374, %v411
        %413 = vmatmul.f32.gmra.mxu0 %v336
        %v414 = vpop.f32.mrf.mxu0
        %v415 = vadd.f32 %v377, %v414
        %416 = vdwg.mxu0
        %v417 = vxor.u32 %v397, 2147483648
        %v418 = vxor.u32 %v400, 2147483648
        %v419 = vxor.u32 %v403, 2147483648
        %v420 = vxor.u32 %v406, 2147483648
        %v421 = vxor.u32 %v409, 2147483648
        %v422 = vxor.u32 %v412, 2147483648
        %v423 = vxor.u32 %v415, 2147483648
        %v424 = vmul.f32 %v417, 1.442695
        %v425 = vpow.pop %v424
        %v426 = vmul.f32 %v418, 1.442695
        %v427 = vpow.pop %v426
        %v428 = vmul.f32 %v419, 1.442695
        %v429 = vpow.pop %v428
        %v430 = vmul.f32 %v420, 1.442695
        %v431 = vpow.pop %v430
        %v432 = vmul.f32 %v421, 1.442695
        %v433 = vpow.pop %v432
        %v434 = vmul.f32 %v422, 1.442695
        %v435 = vpow.pop %v434
        %v436 = vmul.f32 %v423, 1.442695
        %v437 = vpow.pop %v436
        %v438 = vadd.f32 %v425, 1.0
        %v439 = vadd.f32 %v427, 1.0
        %v440 = vadd.f32 %v429, 1.0
        %v441 = vadd.f32 %v431, 1.0
        %v442 = vadd.f32 %v433, 1.0
        %v443 = vadd.f32 %v435, 1.0
        %v444 = vadd.f32 %v437, 1.0
        %v445 = vrcp.pop %v438
        %v446 = vmul.f32 %v438, %v445
        %v447 = vsub.f32 1.0, %v446
        %v448 = vmul.f32 %v445, %v447
        %v449 = vadd.f32 %v445, %v448
        %vm450 = vweird.f32 %v438
        %vm451 = vweird.f32 %v445
        %vm452 = vmor %vm450, %vm451
        %v453 = vsel %vm452, %v445, %v449
        %v454 = vand.u32 2147483647, %v438
        %vm455 = vcmp.eq.f32.partialorder %v454, 8.507059e+37
        %v456 = vand.u32 %v438, 2147483648
        %v457 = vor.u32 1.1754944e-38, %v456
        %v458 = vsel %vm455, %v457, %v453
        %v459 = vmul.f32 1.0, %v458
        %v460 = vrcp.pop %v439
        %v461 = vmul.f32 %v439, %v460
        %v462 = vsub.f32 1.0, %v461
        %v463 = vmul.f32 %v460, %v462
        %v464 = vadd.f32 %v460, %v463
        %vm465 = vweird.f32 %v439
        %vm466 = vweird.f32 %v460
        %vm467 = vmor %vm465, %vm466
        %v468 = vsel %vm467, %v460, %v464
        %v469 = vand.u32 2147483647, %v439
        %vm470 = vcmp.eq.f32.partialorder %v469, 8.507059e+37
        %v471 = vand.u32 %v439, 2147483648
        %v472 = vor.u32 1.1754944e-38, %v471
        %v473 = vsel %vm470, %v472, %v468
        %v474 = vmul.f32 1.0, %v473
        %v475 = vrcp.pop %v440
        %v476 = vmul.f32 %v440, %v475
        %v477 = vsub.f32 1.0, %v476
        %v478 = vmul.f32 %v475, %v477
        %v479 = vadd.f32 %v475, %v478
        %vm480 = vweird.f32 %v440
        %vm481 = vweird.f32 %v475
        %vm482 = vmor %vm480, %vm481
        %v483 = vsel %vm482, %v475, %v479
        %v484 = vand.u32 2147483647, %v440
        %vm485 = vcmp.eq.f32.partialorder %v484, 8.507059e+37
        %v486 = vand.u32 %v440, 2147483648
        %v487 = vor.u32 1.1754944e-38, %v486
        %v488 = vsel %vm485, %v487, %v483
        %v489 = vmul.f32 1.0, %v488
        %v490 = vrcp.pop %v441
        %v491 = vmul.f32 %v441, %v490
        %v492 = vsub.f32 1.0, %v491
        %v493 = vmul.f32 %v490, %v492
        %v494 = vadd.f32 %v490, %v493
        %vm495 = vweird.f32 %v441
        %vm496 = vweird.f32 %v490
        %vm497 = vmor %vm495, %vm496
        %v498 = vsel %vm497, %v490, %v494
        %v499 = vand.u32 2147483647, %v441
        %vm500 = vcmp.eq.f32.partialorder %v499, 8.507059e+37
        %v501 = vand.u32 %v441, 2147483648
        %v502 = vor.u32 1.1754944e-38, %v501
        %v503 = vsel %vm500, %v502, %v498
        %v504 = vmul.f32 1.0, %v503
        %v505 = vrcp.pop %v442
        %v506 = vmul.f32 %v442, %v505
        %v507 = vsub.f32 1.0, %v506
        %v508 = vmul.f32 %v505, %v507
        %v509 = vadd.f32 %v505, %v508
        %vm510 = vweird.f32 %v442
        %vm511 = vweird.f32 %v505
        %vm512 = vmor %vm510, %vm511
        %v513 = vsel %vm512, %v505, %v509
        %v514 = vand.u32 2147483647, %v442
        %vm515 = vcmp.eq.f32.partialorder %v514, 8.507059e+37
        %v516 = vand.u32 %v442, 2147483648
        %v517 = vor.u32 1.1754944e-38, %v516
        %v518 = vsel %vm515, %v517, %v513
        %v519 = vmul.f32 1.0, %v518
        %v520 = vrcp.pop %v443
        %v521 = vmul.f32 %v443, %v520
        %v522 = vsub.f32 1.0, %v521
        %v523 = vmul.f32 %v520, %v522
        %v524 = vadd.f32 %v520, %v523
        %vm525 = vweird.f32 %v443
        %vm526 = vweird.f32 %v520
        %vm527 = vmor %vm525, %vm526
        %v528 = vsel %vm527, %v520, %v524
        %v529 = vand.u32 2147483647, %v443
        %vm530 = vcmp.eq.f32.partialorder %v529, 8.507059e+37
        %v531 = vand.u32 %v443, 2147483648
        %v532 = vor.u32 1.1754944e-38, %v531
        %v533 = vsel %vm530, %v532, %v528
        %v534 = vmul.f32 1.0, %v533
        %v535 = vrcp.pop %v444
        %v536 = vmul.f32 %v444, %v535
        %v537 = vsub.f32 1.0, %v536
        %v538 = vmul.f32 %v535, %v537
        %v539 = vadd.f32 %v535, %v538
        %vm540 = vweird.f32 %v444
        %vm541 = vweird.f32 %v535
        %vm542 = vmor %vm540, %vm541
        %v543 = vsel %vm542, %v535, %v539
        %v544 = vand.u32 2147483647, %v444
        %vm545 = vcmp.eq.f32.partialorder %v544, 8.507059e+37
        %v546 = vand.u32 %v444, 2147483648
        %v547 = vor.u32 1.1754944e-38, %v546
        %v548 = vsel %vm545, %v547, %v543
        %v549 = vmul.f32 1.0, %v548
        %v550 = vld [vmem:[%s4] sm:$0x3]
        %v552 = vperm.slane %v550, 0
        %v553 = vperm.slane %v550, 1
        %556 = vmatpush.msra.mxu0 %v321
        %557 = vmatpush.msra.mxu0 %v319
        %558 = vmatpush.msra.mxu0 %v317
        %559 = vmatpush.msra.mxu0 %v315
        %560 = vmatpush.msra.mxu0 %v313
        %561 = vmatpush.msra.mxu0 %v311
        %562 = vmatpush.msra.mxu0 %v309
        %563 = vmatpush.msra.mxu0 %v307
        %564 = vmatpush.msra.mxu0 %v305
        %565 = vmatpush.msra.mxu0 %v303
        %566 = vmatpush.msra.mxu0 %v301
        %567 = vmatpush.msra.mxu0 %v299
        %568 = vmatpush.msra.mxu0 %v297
        %569 = vmatpush.msra.mxu0 %v295
        %570 = vmatpush.msra.mxu0 %v293
        %571 = vmatpush.msra.mxu0 %v291
        %572 = vmatmul.f32.gmra.mxu0 %v459
        %v573 = vpop.f32.mrf.mxu0
        %v574 = vadd.f32 %v552, %v573
        %575 = vmatmul.f32.gmra.mxu0 %v474
        %v576 = vpop.f32.mrf.mxu0
        %v577 = vadd.f32 %v552, %v576
        %578 = vmatmul.f32.gmra.mxu0 %v489
        %v579 = vpop.f32.mrf.mxu0
        %v580 = vadd.f32 %v552, %v579
        %581 = vmatmul.f32.gmra.mxu0 %v504
        %v582 = vpop.f32.mrf.mxu0
        %v583 = vadd.f32 %v552, %v582
        %584 = vmatmul.f32.gmra.mxu0 %v519
        %v585 = vpop.f32.mrf.mxu0
        %v586 = vadd.f32 %v552, %v585
        %587 = vmatmul.f32.gmra.mxu0 %v534
        %v588 = vpop.f32.mrf.mxu0
        %v589 = vadd.f32 %v552, %v588
        %590 = vmatmul.f32.gmra.mxu0 %v549
        %v591 = vpop.f32.mrf.mxu0
        %v592 = vadd.f32 %v552, %v591
        %593 = vdwg.mxu0
        %594 = vmatpush.msra.mxu0 %v322
        %595 = vmatpush.msra.mxu0 %v320
        %596 = vmatpush.msra.mxu0 %v318
        %597 = vmatpush.msra.mxu0 %v316
        %598 = vmatpush.msra.mxu0 %v314
        %599 = vmatpush.msra.mxu0 %v312
        %600 = vmatpush.msra.mxu0 %v310
        %601 = vmatpush.msra.mxu0 %v308
        %602 = vmatpush.msra.mxu0 %v306
        %603 = vmatpush.msra.mxu0 %v304
        %604 = vmatpush.msra.mxu0 %v302
        %605 = vmatpush.msra.mxu0 %v300
        %606 = vmatpush.msra.mxu0 %v298
        %607 = vmatpush.msra.mxu0 %v296
        %608 = vmatpush.msra.mxu0 %v294
        %609 = vmatpush.msra.mxu0 %v292
        %610 = vmatmul.f32.gmra.mxu0 %v459
        %v611 = vpop.f32.mrf.mxu0
        %v612 = vadd.f32 %v553, %v611
        %613 = vmatmul.f32.gmra.mxu0 %v474
        %v614 = vpop.f32.mrf.mxu0
        %v615 = vadd.f32 %v553, %v614
        %616 = vmatmul.f32.gmra.mxu0 %v489
        %v617 = vpop.f32.mrf.mxu0
        %v618 = vadd.f32 %v553, %v617
        %619 = vmatmul.f32.gmra.mxu0 %v504
        %v620 = vpop.f32.mrf.mxu0
        %v621 = vadd.f32 %v553, %v620
        %622 = vmatmul.f32.gmra.mxu0 %v519
        %v623 = vpop.f32.mrf.mxu0
        %v624 = vadd.f32 %v553, %v623
        %625 = vmatmul.f32.gmra.mxu0 %v534
        %v626 = vpop.f32.mrf.mxu0
        %v627 = vadd.f32 %v553, %v626
        %628 = vmatmul.f32.gmra.mxu0 %v549
        %v629 = vpop.f32.mrf.mxu0
        %v630 = vadd.f32 %v553, %v629
        %631 = vdwg.mxu0
        %v632 = vxor.u32 %v574, 2147483648
        %v633 = vxor.u32 %v612, 2147483648
        %v634 = vxor.u32 %v577, 2147483648
        %v635 = vxor.u32 %v615, 2147483648
        %v636 = vxor.u32 %v580, 2147483648
        %v637 = vxor.u32 %v618, 2147483648
        %v638 = vxor.u32 %v583, 2147483648
        %v639 = vxor.u32 %v621, 2147483648
        %v640 = vxor.u32 %v586, 2147483648
        %v641 = vxor.u32 %v624, 2147483648
        %v642 = vxor.u32 %v589, 2147483648
        %v643 = vxor.u32 %v627, 2147483648
        %v644 = vxor.u32 %v592, 2147483648
        %v645 = vxor.u32 %v630, 2147483648
        %v646 = vmul.f32 %v632, 1.442695
        %v647 = vpow.pop %v646
        %v648 = vmul.f32 %v633, 1.442695
        %v649 = vpow.pop %v648
        %v650 = vmul.f32 %v634, 1.442695
        %v651 = vpow.pop %v650
        %v652 = vmul.f32 %v635, 1.442695
        %v653 = vpow.pop %v652
        %v654 = vmul.f32 %v636, 1.442695
        %v655 = vpow.pop %v654
        %v656 = vmul.f32 %v637, 1.442695
        %v657 = vpow.pop %v656
        %v658 = vmul.f32 %v638, 1.442695
        %v659 = vpow.pop %v658
        %v660 = vmul.f32 %v639, 1.442695
        %v661 = vpow.pop %v660
        %v662 = vmul.f32 %v640, 1.442695
        %v663 = vpow.pop %v662
        %v664 = vmul.f32 %v641, 1.442695
        %v665 = vpow.pop %v664
        %v666 = vmul.f32 %v642, 1.442695
        %v667 = vpow.pop %v666
        %v668 = vmul.f32 %v643, 1.442695
        %v669 = vpow.pop %v668
        %v670 = vmul.f32 %v644, 1.442695
        %v671 = vpow.pop %v670
        %v672 = vmul.f32 %v645, 1.442695
        %v673 = vpow.pop %v672
        %v674 = vadd.f32 %v647, 1.0
        %v675 = vadd.f32 %v649, 1.0
        %v676 = vadd.f32 %v651, 1.0
        %v677 = vadd.f32 %v653, 1.0
        %v678 = vadd.f32 %v655, 1.0
        %v679 = vadd.f32 %v657, 1.0
        %v680 = vadd.f32 %v659, 1.0
        %v681 = vadd.f32 %v661, 1.0
        %v682 = vadd.f32 %v663, 1.0
        %v683 = vadd.f32 %v665, 1.0
        %v684 = vadd.f32 %v667, 1.0
        %v685 = vadd.f32 %v669, 1.0
        %v686 = vadd.f32 %v671, 1.0
        %v687 = vadd.f32 %v673, 1.0
        %v688 = vrcp.pop %v674
        %v689 = vmul.f32 %v674, %v688
        %v690 = vsub.f32 1.0, %v689
        %v691 = vmul.f32 %v688, %v690
        %v692 = vadd.f32 %v688, %v691
        %vm693 = vweird.f32 %v674
        %vm694 = vweird.f32 %v688
        %vm695 = vmor %vm693, %vm694
        %v696 = vsel %vm695, %v688, %v692
        %v697 = vand.u32 2147483647, %v674
        %vm698 = vcmp.eq.f32.partialorder %v697, 8.507059e+37
        %v699 = vand.u32 %v674, 2147483648
        %v700 = vor.u32 1.1754944e-38, %v699
        %v701 = vsel %vm698, %v700, %v696
        %v702 = vmul.f32 1.0, %v701
        %v703 = vrcp.pop %v675
        %v704 = vmul.f32 %v675, %v703
        %v705 = vsub.f32 1.0, %v704
        %v706 = vmul.f32 %v703, %v705
        %v707 = vadd.f32 %v703, %v706
        %vm708 = vweird.f32 %v675
        %vm709 = vweird.f32 %v703
        %vm710 = vmor %vm708, %vm709
        %v711 = vsel %vm710, %v703, %v707
        %v712 = vand.u32 2147483647, %v675
        %vm713 = vcmp.eq.f32.partialorder %v712, 8.507059e+37
        %v714 = vand.u32 %v675, 2147483648
        %v715 = vor.u32 1.1754944e-38, %v714
        %v716 = vsel %vm713, %v715, %v711
        %v717 = vmul.f32 1.0, %v716
        %v718 = vrcp.pop %v676
        %v719 = vmul.f32 %v676, %v718
        %v720 = vsub.f32 1.0, %v719
        %v721 = vmul.f32 %v718, %v720
        %v722 = vadd.f32 %v718, %v721
        %vm723 = vweird.f32 %v676
        %vm724 = vweird.f32 %v718
        %vm725 = vmor %vm723, %vm724
        %v726 = vsel %vm725, %v718, %v722
        %v727 = vand.u32 2147483647, %v676
        %vm728 = vcmp.eq.f32.partialorder %v727, 8.507059e+37
        %v729 = vand.u32 %v676, 2147483648
        %v730 = vor.u32 1.1754944e-38, %v729
        %v731 = vsel %vm728, %v730, %v726
        %v732 = vmul.f32 1.0, %v731
        %v733 = vrcp.pop %v677
        %v734 = vmul.f32 %v677, %v733
        %v735 = vsub.f32 1.0, %v734
        %v736 = vmul.f32 %v733, %v735
        %v737 = vadd.f32 %v733, %v736
        %vm738 = vweird.f32 %v677
        %vm739 = vweird.f32 %v733
        %vm740 = vmor %vm738, %vm739
        %v741 = vsel %vm740, %v733, %v737
        %v742 = vand.u32 2147483647, %v677
        %vm743 = vcmp.eq.f32.partialorder %v742, 8.507059e+37
        %v744 = vand.u32 %v677, 2147483648
        %v745 = vor.u32 1.1754944e-38, %v744
        %v746 = vsel %vm743, %v745, %v741
        %v747 = vmul.f32 1.0, %v746
        %v748 = vrcp.pop %v678
        %v749 = vmul.f32 %v678, %v748
        %v750 = vsub.f32 1.0, %v749
        %v751 = vmul.f32 %v748, %v750
        %v752 = vadd.f32 %v748, %v751
        %vm753 = vweird.f32 %v678
        %vm754 = vweird.f32 %v748
        %vm755 = vmor %vm753, %vm754
        %v756 = vsel %vm755, %v748, %v752
        %v757 = vand.u32 2147483647, %v678
        %vm758 = vcmp.eq.f32.partialorder %v757, 8.507059e+37
        %v759 = vand.u32 %v678, 2147483648
        %v760 = vor.u32 1.1754944e-38, %v759
        %v761 = vsel %vm758, %v760, %v756
        %v762 = vmul.f32 1.0, %v761
        %v763 = vrcp.pop %v679
        %v764 = vmul.f32 %v679, %v763
        %v765 = vsub.f32 1.0, %v764
        %v766 = vmul.f32 %v763, %v765
        %v767 = vadd.f32 %v763, %v766
        %vm768 = vweird.f32 %v679
        %vm769 = vweird.f32 %v763
        %vm770 = vmor %vm768, %vm769
        %v771 = vsel %vm770, %v763, %v767
        %v772 = vand.u32 2147483647, %v679
        %vm773 = vcmp.eq.f32.partialorder %v772, 8.507059e+37
        %v774 = vand.u32 %v679, 2147483648
        %v775 = vor.u32 1.1754944e-38, %v774
        %v776 = vsel %vm773, %v775, %v771
        %v777 = vmul.f32 1.0, %v776
        %v778 = vrcp.pop %v680
        %v779 = vmul.f32 %v680, %v778
        %v780 = vsub.f32 1.0, %v779
        %v781 = vmul.f32 %v778, %v780
        %v782 = vadd.f32 %v778, %v781
        %vm783 = vweird.f32 %v680
        %vm784 = vweird.f32 %v778
        %vm785 = vmor %vm783, %vm784
        %v786 = vsel %vm785, %v778, %v782
        %v787 = vand.u32 2147483647, %v680
        %vm788 = vcmp.eq.f32.partialorder %v787, 8.507059e+37
        %v789 = vand.u32 %v680, 2147483648
        %v790 = vor.u32 1.1754944e-38, %v789
        %v791 = vsel %vm788, %v790, %v786
        %v792 = vmul.f32 1.0, %v791
        %v793 = vrcp.pop %v681
        %v794 = vmul.f32 %v681, %v793
        %v795 = vsub.f32 1.0, %v794
        %v796 = vmul.f32 %v793, %v795
        %v797 = vadd.f32 %v793, %v796
        %vm798 = vweird.f32 %v681
        %vm799 = vweird.f32 %v793
        %vm800 = vmor %vm798, %vm799
        %v801 = vsel %vm800, %v793, %v797
        %v802 = vand.u32 2147483647, %v681
        %vm803 = vcmp.eq.f32.partialorder %v802, 8.507059e+37
        %v804 = vand.u32 %v681, 2147483648
        %v805 = vor.u32 1.1754944e-38, %v804
        %v806 = vsel %vm803, %v805, %v801
        %v807 = vmul.f32 1.0, %v806
        %v808 = vrcp.pop %v682
        %v809 = vmul.f32 %v682, %v808
        %v810 = vsub.f32 1.0, %v809
        %v811 = vmul.f32 %v808, %v810
        %v812 = vadd.f32 %v808, %v811
        %vm813 = vweird.f32 %v682
        %vm814 = vweird.f32 %v808
        %vm815 = vmor %vm813, %vm814
        %v816 = vsel %vm815, %v808, %v812
        %v817 = vand.u32 2147483647, %v682
        %vm818 = vcmp.eq.f32.partialorder %v817, 8.507059e+37
        %v819 = vand.u32 %v682, 2147483648
        %v820 = vor.u32 1.1754944e-38, %v819
        %v821 = vsel %vm818, %v820, %v816
        %v822 = vmul.f32 1.0, %v821
        %v823 = vrcp.pop %v683
        %v824 = vmul.f32 %v683, %v823
        %v825 = vsub.f32 1.0, %v824
        %v826 = vmul.f32 %v823, %v825
        %v827 = vadd.f32 %v823, %v826
        %vm828 = vweird.f32 %v683
        %vm829 = vweird.f32 %v823
        %vm830 = vmor %vm828, %vm829
        %v831 = vsel %vm830, %v823, %v827
        %v832 = vand.u32 2147483647, %v683
        %vm833 = vcmp.eq.f32.partialorder %v832, 8.507059e+37
        %v834 = vand.u32 %v683, 2147483648
        %v835 = vor.u32 1.1754944e-38, %v834
        %v836 = vsel %vm833, %v835, %v831
        %v837 = vmul.f32 1.0, %v836
        %v838 = vrcp.pop %v684
        %v839 = vmul.f32 %v684, %v838
        %v840 = vsub.f32 1.0, %v839
        %v841 = vmul.f32 %v838, %v840
        %v842 = vadd.f32 %v838, %v841
        %vm843 = vweird.f32 %v684
        %vm844 = vweird.f32 %v838
        %vm845 = vmor %vm843, %vm844
        %v846 = vsel %vm845, %v838, %v842
        %v847 = vand.u32 2147483647, %v684
        %vm848 = vcmp.eq.f32.partialorder %v847, 8.507059e+37
        %v849 = vand.u32 %v684, 2147483648
        %v850 = vor.u32 1.1754944e-38, %v849
        %v851 = vsel %vm848, %v850, %v846
        %v852 = vmul.f32 1.0, %v851
        %v853 = vrcp.pop %v685
        %v854 = vmul.f32 %v685, %v853
        %v855 = vsub.f32 1.0, %v854
        %v856 = vmul.f32 %v853, %v855
        %v857 = vadd.f32 %v853, %v856
        %vm858 = vweird.f32 %v685
        %vm859 = vweird.f32 %v853
        %vm860 = vmor %vm858, %vm859
        %v861 = vsel %vm860, %v853, %v857
        %v862 = vand.u32 2147483647, %v685
        %vm863 = vcmp.eq.f32.partialorder %v862, 8.507059e+37
        %v864 = vand.u32 %v685, 2147483648
        %v865 = vor.u32 1.1754944e-38, %v864
        %v866 = vsel %vm863, %v865, %v861
        %v867 = vmul.f32 1.0, %v866
        %v868 = vrcp.pop %v686
        %v869 = vmul.f32 %v686, %v868
        %v870 = vsub.f32 1.0, %v869
        %v871 = vmul.f32 %v868, %v870
        %v872 = vadd.f32 %v868, %v871
        %vm873 = vweird.f32 %v686
        %vm874 = vweird.f32 %v868
        %vm875 = vmor %vm873, %vm874
        %v876 = vsel %vm875, %v868, %v872
        %v877 = vand.u32 2147483647, %v686
        %vm878 = vcmp.eq.f32.partialorder %v877, 8.507059e+37
        %v879 = vand.u32 %v686, 2147483648
        %v880 = vor.u32 1.1754944e-38, %v879
        %v881 = vsel %vm878, %v880, %v876
        %v882 = vmul.f32 1.0, %v881
        %v883 = vrcp.pop %v687
        %v884 = vmul.f32 %v687, %v883
        %v885 = vsub.f32 1.0, %v884
        %v886 = vmul.f32 %v883, %v885
        %v887 = vadd.f32 %v883, %v886
        %vm888 = vweird.f32 %v687
        %vm889 = vweird.f32 %v883
        %vm890 = vmor %vm888, %vm889
        %v891 = vsel %vm890, %v883, %v887
        %v892 = vand.u32 2147483647, %v687
        %vm893 = vcmp.eq.f32.partialorder %v892, 8.507059e+37
        %v894 = vand.u32 %v687, 2147483648
        %v895 = vor.u32 1.1754944e-38, %v894
        %v896 = vsel %vm893, %v895, %v891
        %v897 = vmul.f32 1.0, %v896
        %898 = vst [vmem:[%s235] sm:$0xff] %v702
        %899 = vst [vmem:[%s235 + $0x8] sm:$0xff] %v717
        %900 = vst [vmem:[%s235 + $0x10] sm:$0xff] %v732
        %901 = vst [vmem:[%s235 + $0x18] sm:$0xff] %v747
        %902 = vst [vmem:[%s235 + $0x20] sm:$0xff] %v762
        %903 = vst [vmem:[%s235 + $0x28] sm:$0xff] %v777
        %904 = vst [vmem:[%s235 + $0x30] sm:$0xff] %v792
        %905 = vst [vmem:[%s235 + $0x38] sm:$0xff] %v807
        %906 = vst [vmem:[%s235 + $0x40] sm:$0xff] %v822
        %907 = vst [vmem:[%s235 + $0x48] sm:$0xff] %v837
        %908 = vst [vmem:[%s235 + $0x50] sm:$0xff] %v852
        %909 = vst [vmem:[%s235 + $0x58] sm:$0xff] %v867
        %910 = vst [vmem:[%s235 + $0x60] sm:$0xff] %v882
        %911 = vst [vmem:[%s235 + $0x68] sm:$0xff] %v897
        %s912 = sand.u32 %s137, 1
        %s913 = scalar_lea.sflag [#allocation3], %s912
        %s914 = sand.u32 %s137, 1
        %s915 = smul.addr %s914, 112
        %s916 = scalar_lea.vmem [#allocation2], %s915
        // Predicated region
        $region41: #{autoencoder_forward.1} parent=39 // pred_check
          %p917 = pneg %p147
        $region42: #{autoencoder_forward.1} parent=39 // pred_check_branch
          %919 = sbr.rel (%p917) target = $region44
        $region43: #{autoencoder_forward.1} parent=39 // pred_region
          %s920 = smul.u32 7, %s19
          %s921 = ssub.s32 13, %s920
          %p922 = scmp.lt.s32.totalorder %s921, 7
          %s923 = scalar_select %p922, %s921, 7
          %s924 = smul.u32 8, %s923
          %s925 = smul.u32 %s924, 2
          %s926 = ssub.s32 112, %s925
          %s927 = sshll.u32 %s926, 4
          %928 = vsyncadd %s913, %s927
          %p929 = scmp.ne.s32.totalorder 0, %s925
          %s930 = smul.addr %s920, 2
          %s931 = smul.addr %s930, 8
          %s932 = scalar_lea.hbm %s5, %s931
          %s933 = smul.u32 16, %s923
          %s934 = sshll.u32 %s916, 4
          %s935 = int_to_ptr.vmem [resolvable:$true] %s934
          %s936 = sshll.u32 %s932, 4
          %s937 = int_to_ptr.hbm [resolvable:$true] %s936
          %s938 = sshll.u32 %s933, 4
          %942 = dma.vmem_to_hbm [thread:$0]  (%p929), %s935, %s938, %s937, %s913, 256, 256, 16
        $region44: #{autoencoder_forward.1} parent=39 // pred_fallthru
          _
      $region40: #{autoencoder_forward.1} parent=5 // pred_fallthru
        _
      %p943 = scmp.le.s32.totalorder 2, %s14
      // Predicated region
      $region45: #{autoencoder_forward.1} parent=5 // pred_check
        %p944 = pneg %p943
      $region46: #{autoencoder_forward.1} parent=5 // pred_check_branch
        %946 = sbr.rel (%p944) target = $region48
      $region47: #{autoencoder_forward.1} parent=5 // pred_region
        %s947 = ssub.s32 %s14, 2
        // Predicated region
        $region49: #{autoencoder_forward.1} parent=47 // pred_check
          %p948 = pneg %p153
        $region50: #{autoencoder_forward.1} parent=47 // pred_check_branch
          %950 = sbr.rel (%p948) target = $region52
        $region51: #{autoencoder_forward.1} parent=47 // pred_region
          %s951 = sand.u32 %s138, 1
          %s952 = scalar_lea.sflag [#allocation3], %s951
          %s953 = sand.u32 %s138, 1
          %s954 = smul.addr %s953, 112
          %s955 = scalar_lea.vmem [#allocation2], %s954
          %957 = dma.done %s952, 1792
        $region52: #{autoencoder_forward.1} parent=47 // pred_fallthru
          _
      $region48: #{autoencoder_forward.1} parent=5 // pred_fallthru
        _
    $region6: #{autoencoder_forward.1} parent=1 // loop_footer
      %s18 = sadd.s32 1, %s14
    $region7: #{autoencoder_forward.1} parent=1 // loop_footer_branch
      %13 = sbr.rel target = $region3
    $region8: #{autoencoder_forward.1} parent=1 // loop_exit
      _
    %958 = vsyncpa [#allocation3], 1
    %s959 = scalar_lea.sflag [#allocation3], 1
    %960 = vsyncpa %s959, 1

</llo_original>
